<compile_context>
chip_gen: v5e
topology: v5e:2x2
jax: 0.10.0
libtpu: 0.0.40
codegen_flags: <defaults>
</compile_context>

<pallas_src>
import functools

import jax
import jax.numpy as jnp
from jax.experimental import pallas as pl
from jax.experimental.pallas import tpu as pltpu

P_DROP = 0.6   # matches SimpleModel default p=0.6
LANE = 128
SUBLANE = 8


def _round_up(n, m):
    return ((n + m - 1) // m) * m


def _pad_to(a, shape):
    pads = [(0, t - s) for s, t in zip(a.shape, shape)]
    if all(p == (0, 0) for p in pads):
        return a
    return jnp.pad(a, pads)


def _simple_model_kernel(x_ref, w1_ref, b1_ref, w2_ref, b2_ref, *rest, training):
    if training:
        mask_ref, o_ref = rest
    else:
        (o_ref,) = rest

    # fc1: (TB, D) @ (D, Hp) + (1, Hp)  -- bf16 operands, f32 accumulation on the MXU.
    h = jnp.dot(x_ref[...].astype(jnp.bfloat16), w1_ref[...],
                preferred_element_type=jnp.float32) + b1_ref[...]

    if training:
        # Inverted dropout: mask already holds keep * 1/(1-p) -> one VPU multiply.
        h = h * mask_ref[...].astype(jnp.float32)

    # fc2: (TB, Hp) @ (Hp, Op) + (1, Op)
    out = jnp.dot(h.astype(jnp.bfloat16), w2_ref[...],
                  preferred_element_type=jnp.float32) + b2_ref[...]
    o_ref[...] = out.astype(o_ref.dtype)


def simple_model_forward(x, w1, b1, w2, b2, dropout_key=None, *,
                         p=P_DROP, training=True, max_batch_tile=512):
    """Fused fc1 -> dropout -> fc2 forward pass (SimpleModel.forward / lastForward).

    x:  (B, D) float32
    w1: (D, H) float32   (transpose of PyTorch fc1.weight)
    b1: (1, H) float32
    w2: (H, O) float32   (transpose of PyTorch fc2.weight)
    b2: (1, O) float32
    dropout_key: jax PRNG key (required when training and p > 0)
    """
    B, D = x.shape
    H = w1.shape[1]
    O = w2.shape[1]

    # Lane-dense padded hidden/output dims; batch padded to the tile size.
    Hp = _round_up(H, LANE)
    Op = _round_up(O, LANE)
    TB = min(max_batch_tile, _round_up(B, SUBLANE))
    Bp = _round_up(B, TB)
    num_tiles = Bp // TB

    x_p = _pad_to(x.astype(jnp.float32), (Bp, D))
    w1_p = _pad_to(w1.astype(jnp.float32), (D, Hp)).astype(jnp.bfloat16)
    b1_p = _pad_to(b1.astype(jnp.float32), (1, Hp))
    w2_p = _pad_to(w2.astype(jnp.float32), (Hp, Op)).astype(jnp.bfloat16)
    b2_p = _pad_to(b2.astype(jnp.float32), (1, Op))

    in_specs = [
        pl.BlockSpec((TB, D), lambda i: (i, 0)),    # x tile   (pipelined over batch)
        pl.BlockSpec((D, Hp), lambda i: (0, 0)),    # w1       (VMEM-resident)
        pl.BlockSpec((1, Hp), lambda i: (0, 0)),    # b1       (resident)
        pl.BlockSpec((Hp, Op), lambda i: (0, 0)),   # w2       (resident)
        pl.BlockSpec((1, Op), lambda i: (0, 0)),    # b2       (resident)
    ]
    args = [x_p, w1_p, b1_p, w2_p, b2_p]

    use_dropout = bool(training) and p > 0.0
    if use_dropout:
        if dropout_key is None:
            raise ValueError("dropout_key is required when training with p > 0")
        keep = jax.random.bernoulli(dropout_key, 1.0 - p, (B, H))
        # keep * 1/(1-p); 0.0 and 2.5 are exactly representable in bf16.
        mask = (keep.astype(jnp.float32) * (1.0 / (1.0 - p))).astype(jnp.bfloat16)
        mask = _pad_to(mask, (Bp, Hp))
        in_specs.append(pl.BlockSpec((TB, Hp), lambda i: (i, 0)))   # mask tile
        args.append(mask)

    kernel = functools.partial(_simple_model_kernel, training=use_dropout)

    out_p = pl.pallas_call(
        kernel,
        out_shape=jax.ShapeDtypeStruct((Bp, Op), jnp.float32),
        grid=(num_tiles,),
        in_specs=in_specs,
        out_specs=pl.BlockSpec((TB, Op), lambda i: (i, 0)),
        compiler_params=pltpu.CompilerParams(
            dimension_semantics=("parallel",),        # batch axis -> both TCs on v7x
            vmem_limit_bytes=32 * 1024 * 1024,        # well inside v7x's 64 MiB VMEM
        ),
    )(*args)

    return out_p[:B, :O]


if __name__ == "__main__":
    # SimpleModel(input_dim=32, output_dim=8, hidden_dim=16) on a batch of 8.
    B, D, H, O = 8, 32, 16, 8

    key = jax.random.PRNGKey(0)
    kx, kw1, kb1, kw2, kb2, kdrop = jax.random.split(key, 6)

    x = jax.random.normal(kx, (B, D), dtype=jnp.float32)

    # PyTorch-Linear-style uniform init, bound 1/sqrt(fan_in).
    bound1 = 1.0 / float(D) ** 0.5
    w1 = jax.random.uniform(kw1, (D, H), jnp.float32, -bound1, bound1)
    b1 = jax.random.uniform(kb1, (1, H), jnp.float32, -bound1, bound1)
    bound2 = 1.0 / float(H) ** 0.5
    w2 = jax.random.uniform(kw2, (H, O), jnp.float32, -bound2, bound2)
    b2 = jax.random.uniform(kb2, (1, O), jnp.float32, -bound2, bound2)

    # Training-mode forward (with dropout), like SimpleModel.forward.
    out_train = simple_model_forward(x, w1, b1, w2, b2, kdrop, training=True)
    out_train = jax.block_until_ready(out_train)

    # Eval-style forward (no dropout), like SimpleModel.lastForward.
    out_eval = simple_model_forward(x, w1, b1, w2, b2, training=False)
    out_eval = jax.block_until_ready(out_eval)

    # Pure-JAX references (regenerate the identical host-side dropout mask).
    keep = jax.random.bernoulli(kdrop, 1.0 - P_DROP, (B, H))
    mask = keep.astype(jnp.float32) * (1.0 / (1.0 - P_DROP))
    ref_eval = (x @ w1 + b1) @ w2 + b2
    ref_train = ((x @ w1 + b1) * mask) @ w2 + b2

    assert out_train.shape == (B, O) and out_eval.shape == (B, O)
    # bf16 MXU inputs with f32 accumulation -> modest tolerance vs the f32 reference.
    assert jnp.allclose(out_eval, ref_eval, atol=5e-2, rtol=5e-2)
    assert jnp.allclose(out_train, ref_train, atol=5e-2, rtol=5e-2)

    print("KERNEL_OK")
</pallas_src>

<mosaic_0001>
module attributes {stable_mosaic.version = 11 : i64} {
  func.func @_simple_model_kernel(%arg0: i32, %arg1: memref<8x32xf32, #tpu.memory_space<vmem>>, %arg2: memref<32x128xbf16, #tpu.memory_space<vmem>>, %arg3: memref<1x128xf32, #tpu.memory_space<vmem>>, %arg4: memref<128x128xbf16, #tpu.memory_space<vmem>>, %arg5: memref<1x128xf32, #tpu.memory_space<vmem>>, %arg6: memref<8x128xbf16, #tpu.memory_space<vmem>>, %arg7: memref<8x128xf32, #tpu.memory_space<vmem>>) attributes {dimension_semantics = [#tpu.dimension_semantics<parallel>], iteration_bounds = array<i64: 1>, scalar_prefetch = 0 : i64, scratch_operands = 0 : i64, tpu.core_type = #tpu.core_type<tc>, window_params = [{transform_indices = @transform_0, window_bounds = array<i64: 8, 32>}, {pipeline_mode = #tpu.pipeline_mode<synchronous>, transform_indices = @transform_1, window_bounds = array<i64: 32, 128>}, {pipeline_mode = #tpu.pipeline_mode<synchronous>, transform_indices = @transform_2, window_bounds = array<i64: 1, 128>}, {pipeline_mode = #tpu.pipeline_mode<synchronous>, transform_indices = @transform_3, window_bounds = array<i64: 128, 128>}, {pipeline_mode = #tpu.pipeline_mode<synchronous>, transform_indices = @transform_4, window_bounds = array<i64: 1, 128>}, {transform_indices = @transform_5, window_bounds = array<i64: 8, 128>}, {transform_indices = @transform_6, window_bounds = array<i64: 8, 128>}]} {
    %c0 = arith.constant 0 : index
    %c0_0 = arith.constant 0 : index
    %0 = vector.load %arg1[%c0, %c0_0] : memref<8x32xf32, #tpu.memory_space<vmem>>, vector<8x32xf32>
    %1 = arith.truncf %0 : vector<8x32xf32> to vector<8x32xbf16>
    %c0_1 = arith.constant 0 : index
    %c0_2 = arith.constant 0 : index
    %2 = vector.load %arg2[%c0_1, %c0_2] : memref<32x128xbf16, #tpu.memory_space<vmem>>, vector<32x128xbf16>
    %cst = arith.constant dense<0.000000e+00> : vector<8x128xf32>
    %3 = tpu.matmul %1, %2, %cst {dimension_numbers = #tpu.dot_dimension_numbers<[1], [0], [0], [1], [0, 0, 1, 1], [], []>} : vector<8x32xbf16>, vector<32x128xbf16>, vector<8x128xf32> -> vector<8x128xf32>
    %c0_3 = arith.constant 0 : index
    %c0_4 = arith.constant 0 : index
    %4 = vector.load %arg3[%c0_3, %c0_4] : memref<1x128xf32, #tpu.memory_space<vmem>>, vector<1x128xf32>
    %5 = vector.broadcast %4 : vector<1x128xf32> to vector<8x128xf32>
    %6 = arith.addf %3, %5 : vector<8x128xf32>
    %c0_5 = arith.constant 0 : index
    %c0_6 = arith.constant 0 : index
    %7 = vector.load %arg6[%c0_5, %c0_6] : memref<8x128xbf16, #tpu.memory_space<vmem>>, vector<8x128xbf16>
    %8 = arith.extf %7 : vector<8x128xbf16> to vector<8x128xf32>
    %9 = arith.mulf %6, %8 : vector<8x128xf32>
    %10 = arith.truncf %9 : vector<8x128xf32> to vector<8x128xbf16>
    %c0_7 = arith.constant 0 : index
    %c0_8 = arith.constant 0 : index
    %11 = vector.load %arg4[%c0_7, %c0_8] : memref<128x128xbf16, #tpu.memory_space<vmem>>, vector<128x128xbf16>
    %cst_9 = arith.constant dense<0.000000e+00> : vector<8x128xf32>
    %12 = tpu.matmul %10, %11, %cst_9 {dimension_numbers = #tpu.dot_dimension_numbers<[1], [0], [0], [1], [0, 0, 1, 1], [], []>} : vector<8x128xbf16>, vector<128x128xbf16>, vector<8x128xf32> -> vector<8x128xf32>
    %c0_10 = arith.constant 0 : index
    %c0_11 = arith.constant 0 : index
    %13 = vector.load %arg5[%c0_10, %c0_11] : memref<1x128xf32, #tpu.memory_space<vmem>>, vector<1x128xf32>
    %14 = vector.broadcast %13 : vector<1x128xf32> to vector<8x128xf32>
    %15 = arith.addf %12, %14 : vector<8x128xf32>
    %c0_12 = arith.constant 0 : index
    %c0_13 = arith.constant 0 : index
    %16 = vector.load %arg7[%c0_12, %c0_13] : memref<8x128xf32, #tpu.memory_space<vmem>>, vector<8x128xf32>
    tpu.vector_store %arg7[%c0_12, %c0_13], %15 {strides = array<i32>} : memref<8x128xf32, #tpu.memory_space<vmem>>, vector<8x128xf32>,
    return
  }
  func.func @transform_0(%arg0: i32) -> (i32, i32) {
    %c0_i32 = arith.constant 0 : i32
    %c0_i32_0 = arith.constant 0 : i32
    return %arg0, %c0_i32 : i32, i32
  }
  func.func @transform_1(%arg0: i32) -> (i32, i32) {
    %c0_i32 = arith.constant 0 : i32
    %c0_i32_0 = arith.constant 0 : i32
    %c0_i32_1 = arith.constant 0 : i32
    return %c0_i32, %c0_i32_0 : i32, i32
  }
  func.func @transform_2(%arg0: i32) -> (i32, i32) {
    %c0_i32 = arith.constant 0 : i32
    %c0_i32_0 = arith.constant 0 : i32
    %c0_i32_1 = arith.constant 0 : i32
    return %c0_i32, %c0_i32_0 : i32, i32
  }
  func.func @transform_3(%arg0: i32) -> (i32, i32) {
    %c0_i32 = arith.constant 0 : i32
    %c0_i32_0 = arith.constant 0 : i32
    %c0_i32_1 = arith.constant 0 : i32
    return %c0_i32, %c0_i32_0 : i32, i32
  }
  func.func @transform_4(%arg0: i32) -> (i32, i32) {
    %c0_i32 = arith.constant 0 : i32
    %c0_i32_0 = arith.constant 0 : i32
    %c0_i32_1 = arith.constant 0 : i32
    return %c0_i32, %c0_i32_0 : i32, i32
  }
  func.func @transform_5(%arg0: i32) -> (i32, i32) {
    %c0_i32 = arith.constant 0 : i32
    %c0_i32_0 = arith.constant 0 : i32
    return %arg0, %c0_i32 : i32, i32
  }
  func.func @transform_6(%arg0: i32) -> (i32, i32) {
    %c0_i32 = arith.constant 0 : i32
    %c0_i32_0 = arith.constant 0 : i32
    return %arg0, %c0_i32 : i32, i32
  }
}

</mosaic_0001>

<llo_original>
// kernel: tpu_custom_call.1
$region0: #{tpu_custom_call.1}
  #allocation0 [shape = 'u32[]', space=smem, size = 0x4, offset = 0x4, fixed_abs, tag = 'smem constant byte address 0x4 - core index']
  #allocation1 [shape = 'u32[72,128]{1,0:T(1,128)}', space=vmem, size = 0x9000, scoped, tag = 'internal scratch']
  %s0 = inlined_call_operand.hbm [shape: f32[8,32], index: 0, kind: input, shape index: {}]
  %s1 = inlined_call_operand.hbm [shape: bf16[32,128], index: 1, kind: input, shape index: {}]
  %s2 = inlined_call_operand.hbm [shape: f32[1,128], index: 2, kind: input, shape index: {}]
  %s3 = inlined_call_operand.hbm [shape: bf16[128,128], index: 3, kind: input, shape index: {}]
  %s4 = inlined_call_operand.hbm [shape: f32[1,128], index: 4, kind: input, shape index: {}]
  %s5 = inlined_call_operand.vmem [shape: bf16[8,128], index: 5, kind: input, shape index: {}]
  %s6 = inlined_call_operand.hbm [shape: f32[8,128], index: 6, kind: output, shape index: {}]
  %s7 = sld [smem:[#allocation0]]
  $region54: #{tpu_custom_call.1} parent=0
    _
  %s9 = ssub.s32 1, %s7
  %s10 = scalar_select 0, %s9, %s7
  $region1: #{tpu_custom_call.1} parent=0
    #allocation2 [shape = 'u8[4096]{0}', space=vmem, size = 0x1000, scoped, tag = 'input window, operand 0, single buffered']
    #allocation3 [shape = 's32[1]{0}', space=sflag, size = 0x4, scoped, tag = 'scoped memory for tpu_custom_call.1']
    #allocation4 [shape = 's32[1]{0}', space=sflag, size = 0x4, scoped, tag = 'scoped memory for tpu_custom_call.1']
    #allocation5 [shape = 'u8[8192]{0}', space=vmem, size = 0x2000, scoped, tag = 'input window, operand 1, single buffered']
    #allocation6 [shape = 's32[1]{0}', space=sflag, size = 0x4, scoped, tag = 'scoped memory for tpu_custom_call.1']
    #allocation7 [shape = 'u8[512]{0}', space=vmem, size = 0x400, scoped, tag = 'input window, operand 2, single buffered']
    #allocation8 [shape = 'u8[32768]{0}', space=vmem, size = 0x8000, scoped, tag = 'input window, operand 3, single buffered']
    #allocation9 [shape = 's32[1]{0}', space=sflag, size = 0x4, scoped, tag = 'scoped memory for tpu_custom_call.1']
    #allocation10 [shape = 'u8[512]{0}', space=vmem, size = 0x400, scoped, tag = 'input window, operand 4, single buffered']
    #allocation11 [shape = 'u8[4096]{0}', space=vmem, size = 0x1000, scoped, tag = 'output window, operand 0, single buffered']
    %11 = vsyncpa [#allocation3], 0
    %12 = vsyncpa [#allocation6], 0
    %13 = vsyncpa [#allocation9], 0
    %14 = vsyncpa [#allocation4], 0
    // Predicated region
    $region2: #{tpu_custom_call.1} parent=1 // pred_check
      _
    $region3: #{tpu_custom_call.1} parent=1 // pred_check_branch
      %16 = sbr.rel (0) target = $region5
    $region4: #{tpu_custom_call.1} parent=1 // pred_region
      %18 = vsyncadd [#allocation3], 0
      %s20 = sshll.u32 %s0, 4
      %s21 = int_to_ptr.hbm [resolvable:$true] %s20
      %s22 = sshll.u32 [#allocation2], 4
      %s23 = int_to_ptr.vmem [resolvable:$true] %s22
      %25 = dma.hbm_to_vmem [thread:$0]  %s21, 128, %s23, [#allocation3]
    $region5: #{tpu_custom_call.1} parent=1 // pred_fallthru
      _
    // Predicated region
    $region6: #{tpu_custom_call.1} parent=1 // pred_check
      _
    $region7: #{tpu_custom_call.1} parent=1 // pred_check_branch
      %27 = sbr.rel (0) target = $region9
    $region8: #{tpu_custom_call.1} parent=1 // pred_region
      %29 = vsyncadd [#allocation6], 0
      %s30 = sshll.u32 %s1, 4
      %s31 = int_to_ptr.hbm [resolvable:$true] %s30
      %s32 = sshll.u32 [#allocation5], 4
      %s33 = int_to_ptr.vmem [resolvable:$true] %s32
      %38 = dma.hbm_to_vmem [thread:$0]  %s31, 256, %s33, [#allocation6], 64, 64, 4
    $region9: #{tpu_custom_call.1} parent=1 // pred_fallthru
      _
    // Predicated region
    $region10: #{tpu_custom_call.1} parent=1 // pred_check
      _
    $region11: #{tpu_custom_call.1} parent=1 // pred_check_branch
      %40 = sbr.rel (0) target = $region13
    $region12: #{tpu_custom_call.1} parent=1 // pred_region
      %42 = vsyncadd [#allocation6], 0
      %s44 = sshll.u32 %s2, 4
      %s45 = int_to_ptr.hbm [resolvable:$true] %s44
      %s46 = sshll.u32 [#allocation7], 4
      %s47 = int_to_ptr.vmem [resolvable:$true] %s46
      %49 = dma.hbm_to_vmem [thread:$0]  %s45, 16, %s47, [#allocation6]
    $region13: #{tpu_custom_call.1} parent=1 // pred_fallthru
      _
    // Predicated region
    $region14: #{tpu_custom_call.1} parent=1 // pred_check
      _
    $region15: #{tpu_custom_call.1} parent=1 // pred_check_branch
      %51 = sbr.rel (0) target = $region17
    $region16: #{tpu_custom_call.1} parent=1 // pred_region
      %53 = vsyncadd [#allocation9], 0
      %s54 = sshll.u32 %s3, 4
      %s55 = int_to_ptr.hbm [resolvable:$true] %s54
      %s56 = sshll.u32 [#allocation8], 4
      %s57 = int_to_ptr.vmem [resolvable:$true] %s56
      %62 = dma.hbm_to_vmem [thread:$0]  %s55, 1024, %s57, [#allocation9], 64, 64, 4
    $region17: #{tpu_custom_call.1} parent=1 // pred_fallthru
      _
    // Predicated region
    $region18: #{tpu_custom_call.1} parent=1 // pred_check
      _
    $region19: #{tpu_custom_call.1} parent=1 // pred_check_branch
      %64 = sbr.rel (0) target = $region21
    $region20: #{tpu_custom_call.1} parent=1 // pred_region
      %66 = vsyncadd [#allocation9], 0
      %s68 = sshll.u32 %s4, 4
      %s69 = int_to_ptr.hbm [resolvable:$true] %s68
      %s70 = sshll.u32 [#allocation10], 4
      %s71 = int_to_ptr.vmem [resolvable:$true] %s70
      %73 = dma.hbm_to_vmem [thread:$0]  %s69, 16, %s71, [#allocation9]
    $region21: #{tpu_custom_call.1} parent=1 // pred_fallthru
      _
    // Predicated region
    $region22: #{tpu_custom_call.1} parent=1 // pred_check
      _
    $region23: #{tpu_custom_call.1} parent=1 // pred_check_branch
      %75 = sbr.rel (0) target = $region25
    $region24: #{tpu_custom_call.1} parent=1 // pred_region
      _
    $region25: #{tpu_custom_call.1} parent=1 // pred_fallthru
      _
    // Predicated region
    $region26: #{tpu_custom_call.1} parent=1 // pred_check
      _
    $region27: #{tpu_custom_call.1} parent=1 // pred_check_branch
      %77 = sbr.rel (0) target = $region29
    $region28: #{tpu_custom_call.1} parent=1 // pred_region
      %79 = dma.done [#allocation3], 128
    $region29: #{tpu_custom_call.1} parent=1 // pred_fallthru
      _
    // Predicated region
    $region30: #{tpu_custom_call.1} parent=1 // pred_check
      _
    $region31: #{tpu_custom_call.1} parent=1 // pred_check_branch
      %81 = sbr.rel (0) target = $region33
    $region32: #{tpu_custom_call.1} parent=1 // pred_region
      %83 = dma.done [#allocation6], 256
    $region33: #{tpu_custom_call.1} parent=1 // pred_fallthru
      _
    // Predicated region
    $region34: #{tpu_custom_call.1} parent=1 // pred_check
      _
    $region35: #{tpu_custom_call.1} parent=1 // pred_check_branch
      %85 = sbr.rel (0) target = $region37
    $region36: #{tpu_custom_call.1} parent=1 // pred_region
      %87 = dma.done [#allocation6], 16
    $region37: #{tpu_custom_call.1} parent=1 // pred_fallthru
      _
    // Predicated region
    $region38: #{tpu_custom_call.1} parent=1 // pred_check
      _
    $region39: #{tpu_custom_call.1} parent=1 // pred_check_branch
      %89 = sbr.rel (0) target = $region41
    $region40: #{tpu_custom_call.1} parent=1 // pred_region
      %91 = dma.done [#allocation9], 1024
    $region41: #{tpu_custom_call.1} parent=1 // pred_fallthru
      _
    // Predicated region
    $region42: #{tpu_custom_call.1} parent=1 // pred_check
      _
    $region43: #{tpu_custom_call.1} parent=1 // pred_check_branch
      %93 = sbr.rel (0) target = $region45
    $region44: #{tpu_custom_call.1} parent=1 // pred_region
      %95 = dma.done [#allocation9], 16
    $region45: #{tpu_custom_call.1} parent=1 // pred_fallthru
      _
    %v97 = vld [vmem:[#allocation2] sm:$0xff]
    %v98 = vpack.c.bf16 %v97, %v97
    %v99 = vld [vmem:[#allocation5] sm:$0xf]
    %v100 = vld [vmem:[#allocation5 + $0x4] sm:$0xf]
    %v101 = vld [vmem:[#allocation5 + $0x8] sm:$0xf]
    %v102 = vld [vmem:[#allocation5 + $0xc] sm:$0xf]
    %v103 = vld [vmem:[#allocation7] sm:$0x1]
    %v105 = vperm.slane %v103, 0
    %v111 = vunpack.c.l.b16 %v99
    %v112 = vunpack.c.l.b16 %v100
    %v113 = vunpack.c.l.b16 %v101
    %v114 = vunpack.c.l.b16 %v102
    %v115 = vpack.c.b16 %v112, %v111
    %v116 = vpack.c.b16 %v114, %v113
    %vm119 = vcmask 261120
    %v121 = vsel %vm119, %v98, 0
    %123 = vmatpush.bf16.msra.mxu0 0
    %124 = vmatpush.bf16.msra.mxu0 0
    %125 = vmatpush.bf16.msra.mxu0 0
    %126 = vmatpush.bf16.msra.mxu0 0
    %127 = vmatpush.bf16.msra.mxu0 0
    %128 = vmatpush.bf16.msra.mxu0 0
    %129 = vmatpush.bf16.msra.mxu0 %v116
    %130 = vmatpush.bf16.msra.mxu0 %v115
    %131 = vmatmul.bf16.gmra.mxu0 %v121
    %v132 = vpop.f32.mrf.mxu0
    %v133 = vadd.f32 %v105, %v132
    %v134 = vpop.f32.mrf.mxu0
    %135 = vdwg.mxu0
    %v136 = vld [vmem:[%s5] sm:$0xf]
    %v137 = vunpack.c.l.bf16 %v136
    %v138 = vmul.f32 %v133, %v137
    %v139 = vpack.c.bf16 %v138, %v138
    %v140 = vld [vmem:[#allocation8] sm:$0xf]
    %v141 = vld [vmem:[#allocation8 + $0x4] sm:$0xf]
    %v142 = vld [vmem:[#allocation8 + $0x8] sm:$0xf]
    %v143 = vld [vmem:[#allocation8 + $0xc] sm:$0xf]
    %v144 = vld [vmem:[#allocation8 + $0x10] sm:$0xf]
    %v145 = vld [vmem:[#allocation8 + $0x14] sm:$0xf]
    %v146 = vld [vmem:[#allocation8 + $0x18] sm:$0xf]
    %v147 = vld [vmem:[#allocation8 + $0x1c] sm:$0xf]
    %v148 = vld [vmem:[#allocation8 + $0x20] sm:$0xf]
    %v149 = vld [vmem:[#allocation8 + $0x24] sm:$0xf]
    %v150 = vld [vmem:[#allocation8 + $0x28] sm:$0xf]
    %v151 = vld [vmem:[#allocation8 + $0x2c] sm:$0xf]
    %v152 = vld [vmem:[#allocation8 + $0x30] sm:$0xf]
    %v153 = vld [vmem:[#allocation8 + $0x34] sm:$0xf]
    %v154 = vld [vmem:[#allocation8 + $0x38] sm:$0xf]
    %v155 = vld [vmem:[#allocation8 + $0x3c] sm:$0xf]
    %v156 = vld [vmem:[#allocation10] sm:$0x1]
    %v158 = vperm.slane %v156, 0
    %v176 = vunpack.c.l.b16 %v140
    %v177 = vunpack.c.l.b16 %v141
    %v178 = vunpack.c.l.b16 %v142
    %v179 = vunpack.c.l.b16 %v143
    %v180 = vunpack.c.l.b16 %v144
    %v181 = vunpack.c.l.b16 %v145
    %v182 = vunpack.c.l.b16 %v146
    %v183 = vunpack.c.l.b16 %v147
    %v184 = vunpack.c.l.b16 %v148
    %v185 = vunpack.c.l.b16 %v149
    %v186 = vunpack.c.l.b16 %v150
    %v187 = vunpack.c.l.b16 %v151
    %v188 = vunpack.c.l.b16 %v152
    %v189 = vunpack.c.l.b16 %v153
    %v190 = vunpack.c.l.b16 %v154
    %v191 = vunpack.c.l.b16 %v155
    %v192 = vpack.c.b16 %v177, %v176
    %v193 = vpack.c.b16 %v179, %v178
    %v194 = vpack.c.b16 %v181, %v180
    %v195 = vpack.c.b16 %v183, %v182
    %v196 = vpack.c.b16 %v185, %v184
    %v197 = vpack.c.b16 %v187, %v186
    %v198 = vpack.c.b16 %v189, %v188
    %v199 = vpack.c.b16 %v191, %v190
    %208 = vmatpush.bf16.msra.mxu0 %v199
    %209 = vmatpush.bf16.msra.mxu0 %v198
    %210 = vmatpush.bf16.msra.mxu0 %v197
    %211 = vmatpush.bf16.msra.mxu0 %v196
    %212 = vmatpush.bf16.msra.mxu0 %v195
    %213 = vmatpush.bf16.msra.mxu0 %v194
    %214 = vmatpush.bf16.msra.mxu0 %v193
    %215 = vmatpush.bf16.msra.mxu0 %v192
    %216 = vmatmul.bf16.gmra.mxu0 %v139
    %v217 = vpop.f32.mrf.mxu0
    %v218 = vadd.f32 %v158, %v217
    %v219 = vpop.f32.mrf.mxu0
    %220 = vdwg.mxu0
    %221 = vst [vmem:[#allocation11] sm:$0xff] %v218
    // Predicated region
    $region46: #{tpu_custom_call.1} parent=1 // pred_check
      _
    $region47: #{tpu_custom_call.1} parent=1 // pred_check_branch
      %223 = sbr.rel (0) target = $region49
    $region48: #{tpu_custom_call.1} parent=1 // pred_region
      %225 = vsyncadd [#allocation4], 0
      %s227 = sshll.u32 [#allocation11], 4
      %s228 = int_to_ptr.vmem [resolvable:$true] %s227
      %s229 = sshll.u32 %s6, 4
      %s230 = int_to_ptr.hbm [resolvable:$true] %s229
      %232 = dma.vmem_to_hbm [thread:$0]  %s228, 128, %s230, [#allocation4]
    $region49: #{tpu_custom_call.1} parent=1 // pred_fallthru
      _
    // Predicated region
    $region50: #{tpu_custom_call.1} parent=1 // pred_check
      _
    $region51: #{tpu_custom_call.1} parent=1 // pred_check_branch
      %234 = sbr.rel (0) target = $region53
    $region52: #{tpu_custom_call.1} parent=1 // pred_region
      %236 = dma.done [#allocation4], 128
    $region53: #{tpu_custom_call.1} parent=1 // pred_fallthru
      _
    %237 = vsyncpa [#allocation3], 1
    %238 = vsyncpa [#allocation6], 1
    %239 = vsyncpa [#allocation9], 1
    %240 = vsyncpa [#allocation4], 1

</llo_original>
